<compile_context>
chip_gen: v7x
topology: tpu7x:2x2x1
jax: 0.10.0
libtpu: 0.0.40
codegen_flags: <defaults>
</compile_context>

<pallas_src>
import functools

import jax
import jax.numpy as jnp
from jax.experimental import pallas as pl
from jax.experimental.pallas import tpu as pltpu

SPLIT_SIZES = (3, 2, 5)  # static, from the module (requires C == 10)


def _reverse_split_cat_kernel(x_ref, o_ref, *, copies):
    # x_ref / o_ref: (TB, C*H*W) VMEM blocks.
    # `copies` is a static tuple of (src_start, dst_start, length) in
    # flattened elements.  The Python loop unrolls at trace time into three
    # wide, lane-aligned VMEM copies (pure data movement).
    for src, dst, length in copies:
        o_ref[:, dst:dst + length] = x_ref[:, src:src + length]


def reverse_split_cat(x, *, target_block_bytes=2 << 20):
    N, C, H, W = x.shape
    assert C == sum(SPLIT_SIZES), "channel dim must equal sum(split_sizes)"
    hw = H * W
    feat = C * hw
    xf = x.reshape(N, feat)                     # free for contiguous NCHW
    row_bytes = feat * x.dtype.itemsize

    # ---- static copy plan: output = cat(parts[::-1], dim=channel) ----
    # parts[i - 1 - 2*i] == parts[-1 - i]  =>  out = [part2, part1, part0]
    src_starts = []
    acc = 0
    for s in SPLIT_SIZES:
        src_starts.append(acc * hw)
        acc += s
    copies = []
    dst = 0
    for s, src in zip(reversed(SPLIT_SIZES), reversed(src_starts)):
        copies.append((src, dst, s * hw))
        dst += s * hw
    copies = tuple(copies)

    # ---- pick TB = batch rows per grid step ----
    if N >= 8:
        # Aim for ~target_block_bytes per block, multiple of 8 sublanes,
        # capped at N.  4x block bytes (in+out, double buffered) stays well
        # under the 32 MiB scoped-VMEM default (v7x safe).
        tb = max(8, min(N, target_block_bytes // max(row_bytes, 1)))
        tb = max(8, (tb // 8) * 8)
        tb = min(tb, N)
        # Keep >= 2 grid steps when possible so both v7x TensorCores work.
        if pl.cdiv(N, tb) < 2 and N >= 16:
            tb = max(8, ((N // 2) // 8) * 8)
    else:
        # Small batch: one block covering the whole array (block dims equal
        # the full array dims, so the (8,128) constraint is satisfied).
        tb = N

    grid = (pl.cdiv(N, tb),)

    out_flat = pl.pallas_call(
        functools.partial(_reverse_split_cat_kernel, copies=copies),
        out_shape=jax.ShapeDtypeStruct((N, feat), x.dtype),
        grid=grid,
        in_specs=[pl.BlockSpec((tb, feat), lambda i: (i, 0))],
        out_specs=pl.BlockSpec((tb, feat), lambda i: (i, 0)),
        compiler_params=pltpu.CompilerParams(
            dimension_semantics=("parallel",)),
    )(xf)
    return out_flat.reshape(N, C, H, W)


if __name__ == "__main__":
    key = jax.random.PRNGKey(0)
    # Small shapes consistent with the forward: C must be 3+2+5 = 10.
    x = jax.random.normal(key, (2, 10, 16, 16), dtype=jnp.float32)

    out = jax.block_until_ready(reverse_split_cat(x))

    # Pure-JAX reference for the forward semantics.
    parts = jnp.split(x, [3, 5], axis=1)  # sizes [3, 2, 5]
    ref = jnp.concatenate([parts[2], parts[1], parts[0]], axis=1)

    assert out.shape == ref.shape and out.dtype == ref.dtype
    assert jnp.array_equal(out, ref)
    print("KERNEL_OK")
</pallas_src>

<mosaic_0001>
module attributes {stable_mosaic.version = 11 : i64} {
  func.func @_reverse_split_cat_kernel(%arg0: i32, %arg1: memref<2x2560xf32, #tpu.memory_space<vmem>>, %arg2: memref<2x2560xf32, #tpu.memory_space<vmem>>) attributes {dimension_semantics = [#tpu.dimension_semantics<parallel>], iteration_bounds = array<i64: 1>, scalar_prefetch = 0 : i64, scratch_operands = 0 : i64, tpu.core_type = #tpu.core_type<tc>, window_params = [{transform_indices = @transform_0, window_bounds = array<i64: 2, 2560>}, {transform_indices = @transform_1, window_bounds = array<i64: 2, 2560>}]} {
    %c0 = arith.constant 0 : index
    %c1280 = arith.constant 1280 : index
    %0 = vector.load %arg1[%c0, %c1280] : memref<2x2560xf32, #tpu.memory_space<vmem>>, vector<2x1280xf32>
    %c0_0 = arith.constant 0 : index
    %c0_1 = arith.constant 0 : index
    %1 = vector.load %arg2[%c0_0, %c0_1] : memref<2x2560xf32, #tpu.memory_space<vmem>>, vector<2x1280xf32>
    tpu.vector_store %arg2[%c0_0, %c0_1], %0 {strides = array<i32>} : memref<2x2560xf32, #tpu.memory_space<vmem>>, vector<2x1280xf32>,
    %c0_2 = arith.constant 0 : index
    %c768 = arith.constant 768 : index
    %2 = vector.load %arg1[%c0_2, %c768] : memref<2x2560xf32, #tpu.memory_space<vmem>>, vector<2x512xf32>
    %c0_3 = arith.constant 0 : index
    %c1280_4 = arith.constant 1280 : index
    %3 = vector.load %arg2[%c0_3, %c1280_4] : memref<2x2560xf32, #tpu.memory_space<vmem>>, vector<2x512xf32>
    tpu.vector_store %arg2[%c0_3, %c1280_4], %2 {strides = array<i32>} : memref<2x2560xf32, #tpu.memory_space<vmem>>, vector<2x512xf32>,
    %c0_5 = arith.constant 0 : index
    %c0_6 = arith.constant 0 : index
    %4 = vector.load %arg1[%c0_5, %c0_6] : memref<2x2560xf32, #tpu.memory_space<vmem>>, vector<2x768xf32>
    %c0_7 = arith.constant 0 : index
    %c1792 = arith.constant 1792 : index
    %5 = vector.load %arg2[%c0_7, %c1792] : memref<2x2560xf32, #tpu.memory_space<vmem>>, vector<2x768xf32>
    tpu.vector_store %arg2[%c0_7, %c1792], %4 {strides = array<i32>} : memref<2x2560xf32, #tpu.memory_space<vmem>>, vector<2x768xf32>,
    return
  }
  func.func @transform_0(%arg0: i32) -> (i32, i32) {
    %c0_i32 = arith.constant 0 : i32
    %c0_i32_0 = arith.constant 0 : i32
    return %arg0, %c0_i32 : i32, i32
  }
  func.func @transform_1(%arg0: i32) -> (i32, i32) {
    %c0_i32 = arith.constant 0 : i32
    %c0_i32_0 = arith.constant 0 : i32
    return %arg0, %c0_i32 : i32, i32
  }
}

</mosaic_0001>

<llo_original>
// kernel: tpu_custom_call.1
$region0: #{tpu_custom_call.1}
  #allocation0 [shape = 'u32[]', space=smem, size = 0x4, offset = 0x4, fixed_abs, tag = 'smem constant byte address 0x4 - core index']
  #allocation1 [shape = 'u32[144,128]{1,0:T(1,128)}', space=vmem, size = 0x12000, scoped, tag = 'internal scratch']
  %s0 = inlined_call_operand.hbm [shape: f32[2,2560], index: 0, kind: input, shape index: {}]
  %s1 = inlined_call_operand.hbm [shape: f32[2,2560], index: 1, kind: output, shape index: {}]
  %s2 = sld [smem:[#allocation0]]
  $region18: #{tpu_custom_call.1} parent=0
    _
  %s4 = ssub.s32 1, %s2
  %s5 = scalar_select 0, %s4, %s2
  $region1: #{tpu_custom_call.1} parent=0
    #allocation2 [shape = 'u8[20480]{0}', space=vmem, size = 0x5000, scoped, tag = 'input window, operand 0, single buffered']
    #allocation3 [shape = 's32[1]{0}', space=sflag, size = 0x4, scoped, tag = 'scoped memory for tpu_custom_call.1']
    #allocation4 [shape = 's32[1]{0}', space=sflag, size = 0x4, scoped, tag = 'scoped memory for tpu_custom_call.1']
    #allocation5 [shape = 'u8[20480]{0}', space=vmem, size = 0x5000, scoped, tag = 'output window, operand 0, single buffered']
    %6 = vsyncpa [#allocation3], 0
    %7 = vsyncpa [#allocation4], 0
    // Predicated region
    $region2: #{tpu_custom_call.1} parent=1 // pred_check
      _
    $region3: #{tpu_custom_call.1} parent=1 // pred_check_branch
      %9 = sbr.rel (0) target = $region5
    $region4: #{tpu_custom_call.1} parent=1 // pred_region
      %s11 = ssub.s32 640, 640
      %12 = vsyncadd [#allocation3], %s11
      %s14 = sshll.u32 [#allocation2], 4
      %s15 = int_to_ptr.vmem [resolvable:$true] %s14
      %17 = dma.hbm_to_vmem [thread:$0]  %s0, 640, %s15, [#allocation3]
    $region5: #{tpu_custom_call.1} parent=1 // pred_fallthru
      _
    // Predicated region
    $region6: #{tpu_custom_call.1} parent=1 // pred_check
      _
    $region7: #{tpu_custom_call.1} parent=1 // pred_check_branch
      %19 = sbr.rel (0) target = $region9
    $region8: #{tpu_custom_call.1} parent=1 // pred_region
      %20 = dma.done [#allocation3], 640
    $region9: #{tpu_custom_call.1} parent=1 // pred_fallthru
      _
    %v21 = vld [vmem:[#allocation2 + $0x14] sm:$0xff]
    %v22 = vld [vmem:[#allocation2 + $0x1c] sm:$0xff]
    %v23 = vld [vmem:[#allocation2 + $0x24] sm:$0xf]
    %24 = vst [vmem:[#allocation5] sm:$0xff] %v21
    %25 = vst [vmem:[#allocation5 + $0x8] sm:$0xff] %v22
    %26 = vst [vmem:[#allocation5 + $0x10] sm:$0xf] %v23
    %v27 = vld [vmem:[#allocation2 + $0xc] sm:$0xff]
    %28 = vst [vmem:[#allocation5 + $0x14] sm:$0xff] %v27
    %v29 = vld [vmem:[#allocation2] sm:$0xff]
    %v30 = vld [vmem:[#allocation2 + $0x8] sm:$0xf]
    %31 = vst [vmem:[#allocation5 + $0x1c] sm:$0xff] %v29
    %32 = vst [vmem:[#allocation5 + $0x24] sm:$0xf] %v30
    // Predicated region
    $region10: #{tpu_custom_call.1} parent=1 // pred_check
      _
    $region11: #{tpu_custom_call.1} parent=1 // pred_check_branch
      %34 = sbr.rel (0) target = $region13
    $region12: #{tpu_custom_call.1} parent=1 // pred_region
      %s36 = ssub.s32 640, 640
      %37 = vsyncadd [#allocation4], %s36
      %s39 = sshll.u32 [#allocation5], 4
      %s40 = int_to_ptr.vmem [resolvable:$true] %s39
      %42 = dma.vmem_to_hbm [thread:$0]  %s40, 640, %s1, [#allocation4]
    $region13: #{tpu_custom_call.1} parent=1 // pred_fallthru
      _
    // Predicated region
    $region14: #{tpu_custom_call.1} parent=1 // pred_check
      _
    $region15: #{tpu_custom_call.1} parent=1 // pred_check_branch
      %44 = sbr.rel (0) target = $region17
    $region16: #{tpu_custom_call.1} parent=1 // pred_region
      %45 = dma.done [#allocation4], 640
    $region17: #{tpu_custom_call.1} parent=1 // pred_fallthru
      _
    %46 = vsyncpa [#allocation3], 1
    %47 = vsyncpa [#allocation4], 1

</llo_original>
